<compile_context>
chip_gen: v7x
topology: tpu7x:2x2x1
jax: 0.10.0
libtpu: 0.0.40
codegen_flags: <defaults>
</compile_context>

<pallas_src>
import math

import jax
import jax.numpy as jnp
from jax.experimental import pallas as pl
from jax.experimental.pallas import tpu as pltpu


def _round_up(a: int, b: int) -> int:
    return -(-a // b) * b


def _cdiv(a: int, b: int) -> int:
    return -(-a // b)


def _sublane_granule(dtype) -> int:
    # Second-to-last dim tiling granule: 8 rows for 32-bit, packed dtypes stack
    # along sublanes (16 for bf16, 32 for int8/fp8).
    return max(8, 32 // jnp.dtype(dtype).itemsize)


def _tpu_budgets():
    """Generation-aware VMEM budgets (v5e/v6e: 128 MiB, v7x: 64 MiB per TC)."""
    vmem_cap = 64 * 1024 * 1024  # conservative default (v7x per-TC), safe everywhere
    try:
        info = pltpu.get_tpu_info()
        cap = getattr(info, "vmem_capacity_bytes", None)
        if cap:
            vmem_cap = int(cap)
    except Exception:
        pass
    # Per-buffer x-tile budget: double-buffered x ~ 1/4 of VMEM, leaving room
    # for the weight/bias/labels buffers, accumulator and output.
    x_tile_budget = vmem_cap // 8
    vmem_limit = max(32 * 1024 * 1024,
                     min((vmem_cap * 3) // 4, 96 * 1024 * 1024))
    return x_tile_budget, vmem_limit


# ----------------------------------------------------------------------------
# Kernel bodies
# ----------------------------------------------------------------------------
def _maskiou_kernel_single(x_ref, w_ref, b_ref, labels_ref, out_ref):
    # x_ref: (TILE_N, D)   w_ref: (D, C)   b_ref: (1, C)
    # labels_ref: (TILE_N, 1) i32          out_ref: (TILE_N, 1) f32
    logits = jnp.dot(x_ref[...], w_ref[...],
                     preferred_element_type=jnp.float32) + b_ref[...]
    cls_idx = jax.lax.broadcasted_iota(jnp.int32, logits.shape, 1)
    onehot = cls_idx == labels_ref[...]
    out_ref[...] = jnp.sum(jnp.where(onehot, logits, 0.0),
                           axis=-1, keepdims=True)


def _maskiou_kernel_multi(x_ref, w_ref, b_ref, labels_ref, out_ref, acc_ref):
    # NOTE: correctness requires the reduction axis k (grid axis 1) to be the
    # innermost/last grid dimension so acc_ref persists across all k steps of a
    # row tile before the next row tile starts (asserted in the wrapper).
    k = pl.program_id(1)

    @pl.when(k == 0)
    def _init():
        acc_ref[...] = jnp.zeros_like(acc_ref)

    acc_ref[...] += jnp.dot(x_ref[...], w_ref[...],
                            preferred_element_type=jnp.float32)

    @pl.when(k == pl.num_programs(1) - 1)
    def _finalize():
        logits = acc_ref[...] + b_ref[...]
        cls_idx = jax.lax.broadcasted_iota(jnp.int32, logits.shape, 1)
        onehot = cls_idx == labels_ref[...]
        out_ref[...] = jnp.sum(jnp.where(onehot, logits, 0.0),
                               axis=-1, keepdims=True)


# ----------------------------------------------------------------------------
# Wrapper
# ----------------------------------------------------------------------------
def _maskiou_forward_prepared(x2d, w_t, b2d, labels2d, *,
                              tile_n_cap=512,
                              min_row_tiles=2,
                              x_tile_budget_bytes=None,
                              vmem_limit_bytes=None):
    """Core pallas_call launcher on pre-transposed weights.

    x2d: (N, D) activation (native dtype), w_t: (D, C), b2d: (1, C) f32,
    labels2d: (N, 1) i32.  Returns (N,) f32.
    """
    n, d = x2d.shape
    num_classes = w_t.shape[1]
    assert w_t.shape[0] == d, (w_t.shape, d)

    budget, vmem_limit = _tpu_budgets()
    if x_tile_budget_bytes is not None:
        budget = int(x_tile_budget_bytes)
    if vmem_limit_bytes is not None:
        vmem_limit = int(vmem_limit_bytes)

    itemsize = jnp.dtype(x2d.dtype).itemsize
    granule = _sublane_granule(x2d.dtype)

    # --- Row (N) tiling -----------------------------------------------------
    # Aim for >= min_row_tiles row tiles so the "parallel" axis can shard
    # across TensorCores on megacore parts (v7x); negligible cost elsewhere.
    row_target = _round_up(_cdiv(n, max(1, min_row_tiles)), granule)
    tile_n = min(tile_n_cap, row_target)
    if tile_n >= n:
        tile_n = n  # single full-extent row block (no granule constraint)
    else:
        tile_n = max(granule, (tile_n // granule) * granule)
    num_row_tiles = _cdiv(n, tile_n)  # last block may be partial (masked store)

    # --- Reduction (D) tiling -----------------------------------------------
    w_bytes = d * num_classes * jnp.dtype(w_t.dtype).itemsize
    single_step = (tile_n * d * itemsize + w_bytes) <= budget

    x_in, w_in = x2d, w_t
    if single_step:
        # Whole D in one block: no k axis, no accumulator, no activation pad.
        tile_d = d
        grid = (num_row_tiles,)
        dims = ("parallel",)
        in_specs = [
            pl.BlockSpec((tile_n, tile_d), lambda i: (i, 0)),          # x
            pl.BlockSpec((tile_d, num_classes), lambda i: (0, 0)),     # W^T (resident)
            pl.BlockSpec((1, num_classes), lambda i: (0, 0)),          # bias
            pl.BlockSpec((tile_n, 1), lambda i: (i, 0)),               # labels
        ]
        out_spec = pl.BlockSpec((tile_n, 1), lambda i: (i, 0))
        scratch = []
        kernel = _maskiou_kernel_single
    else:
        # tile_d = 128-multiple divisor of the lane-rounded D, so the grid
        # covers D exactly.  The activation is padded only when D % 128 != 0
        # (<= 127 lanes; rare for conv feature maps) -- padded weight rows are
        # zero so padded columns contribute nothing.
        base_d = _round_up(d, 128)
        if base_d != d:
            x_in = jnp.pad(x2d, ((0, 0), (0, base_d - d)))
            w_in = jnp.pad(w_t, ((0, base_d - d), (0, 0)))
        q_all = base_d // 128
        q_cap = max(1, budget // (tile_n * 128 * itemsize))
        q = 1
        for cand in range(1, q_all + 1):
            if q_all % cand == 0 and cand <= q_cap:
                q = cand
        tile_d = 128 * q
        grid = (num_row_tiles, base_d // tile_d)
        # Reduction axis must be last (innermost) for the accumulator pattern.
        assert len(grid) == 2, "k reduction axis must be the innermost grid axis"
        dims = ("parallel", "arbitrary")
        in_specs = [
            pl.BlockSpec((tile_n, tile_d), lambda i, k: (i, k)),       # x
            pl.BlockSpec((tile_d, num_classes), lambda i, k: (k, 0)),  # W^T
            pl.BlockSpec((1, num_classes), lambda i, k: (0, 0)),       # bias
            pl.BlockSpec((tile_n, 1), lambda i, k: (i, 0)),            # labels
        ]
        out_spec = pl.BlockSpec((tile_n, 1), lambda i, k: (i, 0))
        scratch = [pltpu.VMEM((tile_n, num_classes), jnp.float32)]
        kernel = _maskiou_kernel_multi

    cost = pl.CostEstimate(
        flops=2 * n * d * num_classes,
        transcendentals=0,
        bytes_accessed=itemsize * n * d + w_bytes + 4 * (2 * n + num_classes),
    )

    out = pl.pallas_call(
        kernel,
        out_shape=jax.ShapeDtypeStruct((n, 1), jnp.float32),
        grid_spec=pltpu.PrefetchScalarGridSpec(
            num_scalar_prefetch=0,
            grid=grid,
            in_specs=in_specs,
            out_specs=out_spec,
            scratch_shapes=scratch,
        ),
        compiler_params=pltpu.CompilerParams(
            dimension_semantics=dims,
            vmem_limit_bytes=int(vmem_limit),
        ),
        cost_estimate=cost,
    )(x_in, w_in, b2d, labels2d)

    return out[:, 0]


class MaskIoUOutputPallas:
    """JAX/Pallas port of QANet MaskIoUOutput (forward only).

    The Linear weight is pre-transposed / pre-cast at construction so the
    per-call wrapper only reshapes the activation and launches the kernel.
    """

    def __init__(self, weight, bias, compute_dtype=None):
        weight = jnp.asarray(weight)
        num_classes, dim_in = weight.shape
        self.dim_in = dim_in
        self.num_classes = num_classes
        dt = jnp.dtype(compute_dtype) if compute_dtype is not None else weight.dtype
        # NOTE: with compute_dtype=bfloat16 this is an intentional bf16xbf16
        # matmul (weights cast once here); MXU still accumulates in f32.
        self.w_t = weight.astype(dt).T                                  # (D, C)
        self.b2d = jnp.asarray(bias).astype(jnp.float32).reshape(1, num_classes)

    def __call__(self, x_list, labels=None, **kwargs):
        x = x_list[-1]
        n = x.shape[0]
        x2d = x.reshape(n, -1)                       # keep native dtype (stream as-is)
        w_t = self.w_t
        if w_t.dtype != x2d.dtype:
            # Small (D, C) cast; prefer matching compute_dtype at init.
            w_t = w_t.astype(x2d.dtype)
        if labels is None:
            labels = jnp.zeros((n,), dtype=jnp.int32)
        labels2d = jnp.asarray(labels).astype(jnp.int32).reshape(n, 1)
        out = _maskiou_forward_prepared(x2d, w_t, self.b2d, labels2d, **kwargs)
        return [out]


def maskiou_output_forward(x_list, weight, bias, labels=None, **kwargs):
    """Functional convenience wrapper (prepares weights per call; prefer the
    MaskIoUOutputPallas class in a training/inference loop)."""
    head = MaskIoUOutputPallas(weight, bias, compute_dtype=x_list[-1].dtype)
    return head(x_list, labels, **kwargs)


def init_maskiou_params(key, dim_in, num_classes):
    """Deterministic init matching torch kaiming_uniform_(weight, a=1), bias=0."""
    bound = math.sqrt(3.0 / dim_in)  # sqrt(6 / ((1 + a^2) * fan_in)), a = 1
    weight = jax.random.uniform(key, (num_classes, dim_in),
                                minval=-bound, maxval=bound, dtype=jnp.float32)
    bias = jnp.zeros((num_classes,), dtype=jnp.float32)
    return weight, bias


if __name__ == "__main__":
    # Small synthetic config consistent with the module:
    #   last feature map: (N=2, C=4, H=8, W=8)  ->  dim_in = 4*8*8 = 256
    #   cfg.MASK.NUM_CLASSES = 8
    N, C, H, W = 2, 4, 8, 8
    num_classes = 8
    dim_in = C * H * W

    key = jax.random.PRNGKey(0)
    k_x, k_w, k_lbl = jax.random.split(key, 3)

    x = jax.random.normal(k_x, (N, C, H, W), dtype=jnp.float32)
    weight, bias = init_maskiou_params(k_w, dim_in, num_classes)
    labels = jax.random.randint(k_lbl, (N,), 0, num_classes, dtype=jnp.int32)

    head = MaskIoUOutputPallas(weight, bias)           # f32 head, weights hoisted
    out = head([x], labels)
    out = [jax.block_until_ready(o) for o in out]

    logits_ref = x.reshape(N, -1) @ weight.T + bias
    ref = logits_ref[jnp.arange(N), labels]
    assert out[0].shape == (N,)
    assert jnp.allclose(out[0], ref, atol=1e-4, rtol=1e-4), (out[0], ref)

    # labels=None default path (labels -> zeros), single-step kernel.
    out_default = head([x], None)
    jax.block_until_ready(out_default[0])
    ref_default = logits_ref[jnp.arange(N), jnp.zeros((N,), jnp.int32)]
    assert jnp.allclose(out_default[0], ref_default, atol=1e-4, rtol=1e-4)

    # Multi-tile / multi-k path: N=200 rows, force a tiny x-tile budget so the
    # D reduction splits into 2 k-steps and rows split into 2 tiles
    # (grid (2, 2)), exercising the accumulator + partial row block path.
    N2 = 200
    x2 = jax.random.normal(jax.random.PRNGKey(1), (N2, C, H, W), dtype=jnp.float32)
    lbl2 = jax.random.randint(jax.random.PRNGKey(2), (N2,), 0, num_classes,
                              dtype=jnp.int32)
    out2 = head([x2], lbl2, x_tile_budget_bytes=104 * 128 * 4)
    jax.block_until_ready(out2[0])
    logits2 = x2.reshape(N2, -1) @ weight.T + bias
    ref2 = logits2[jnp.arange(N2), lbl2]
    assert out2[0].shape == (N2,)
    assert jnp.allclose(out2[0], ref2, atol=1e-4, rtol=1e-4)

    # Reduced-precision path: bf16 head (weights cast once at init), bf16
    # activation streamed at half the HBM traffic, MXU accumulates in f32.
    head_bf16 = MaskIoUOutputPallas(weight, bias, compute_dtype=jnp.bfloat16)
    out_bf16 = head_bf16([x.astype(jnp.bfloat16)], labels)
    jax.block_until_ready(out_bf16[0])
    assert jnp.allclose(out_bf16[0], ref, atol=5e-2, rtol=5e-2)

    print("KERNEL_OK")
</pallas_src>

<mosaic_0001>
module attributes {stable_mosaic.version = 11 : i64} {
  func.func @_maskiou_kernel_single(%arg0: i32, %arg1: memref<2x256xf32, #tpu.memory_space<vmem>>, %arg2: memref<256x8xf32, #tpu.memory_space<vmem>>, %arg3: memref<1x8xf32, #tpu.memory_space<vmem>>, %arg4: memref<2x1xi32, #tpu.memory_space<vmem>>, %arg5: memref<2x1xf32, #tpu.memory_space<vmem>>) attributes {dimension_semantics = [#tpu.dimension_semantics<parallel>], iteration_bounds = array<i64: 1>, scalar_prefetch = 0 : i64, scratch_operands = 0 : i64, tpu.core_type = #tpu.core_type<tc>, window_params = [{transform_indices = @transform_0, window_bounds = array<i64: 2, 256>}, {pipeline_mode = #tpu.pipeline_mode<synchronous>, transform_indices = @transform_1, window_bounds = array<i64: 256, 8>}, {pipeline_mode = #tpu.pipeline_mode<synchronous>, transform_indices = @transform_2, window_bounds = array<i64: 1, 8>}, {transform_indices = @transform_3, window_bounds = array<i64: 2, 1>}, {transform_indices = @transform_4, window_bounds = array<i64: 2, 1>}]} {
    %c0 = arith.constant 0 : index
    %c0_0 = arith.constant 0 : index
    %0 = vector.load %arg1[%c0, %c0_0] : memref<2x256xf32, #tpu.memory_space<vmem>>, vector<2x256xf32>
    %c0_1 = arith.constant 0 : index
    %c0_2 = arith.constant 0 : index
    %1 = vector.load %arg2[%c0_1, %c0_2] : memref<256x8xf32, #tpu.memory_space<vmem>>, vector<256x8xf32>
    %cst = arith.constant dense<0.000000e+00> : vector<2x8xf32>
    %2 = tpu.matmul %0, %1, %cst {dimension_numbers = #tpu.dot_dimension_numbers<[1], [0], [0], [1], [0, 0, 1, 1], [], []>} : vector<2x256xf32>, vector<256x8xf32>, vector<2x8xf32> -> vector<2x8xf32>
    %c0_3 = arith.constant 0 : index
    %c0_4 = arith.constant 0 : index
    %3 = vector.load %arg3[%c0_3, %c0_4] : memref<1x8xf32, #tpu.memory_space<vmem>>, vector<1x8xf32>
    %4 = vector.broadcast %3 : vector<1x8xf32> to vector<2x8xf32>
    %5 = arith.addf %2, %4 : vector<2x8xf32>
    %6 = tpu.iota {dimensions = array<i32: 1>} : vector<2x8xi32>
    %c0_5 = arith.constant 0 : index
    %c0_6 = arith.constant 0 : index
    %7 = vector.load %arg4[%c0_5, %c0_6] : memref<2x1xi32, #tpu.memory_space<vmem>>, vector<2x1xi32>
    %8 = vector.broadcast %7 : vector<2x1xi32> to vector<2x8xi32>
    %9 = arith.cmpi eq, %6, %8 : vector<2x8xi32>
    %cst_7 = arith.constant 0.000000e+00 : f32
    %10 = vector.broadcast %cst_7 : f32 to vector<2x8xf32>
    %11 = arith.select %9, %5, %10 : vector<2x8xi1>, vector<2x8xf32>
    %cst_8 = arith.constant dense<0.000000e+00> : vector<2xf32>
    %12 = vector.multi_reduction <add>, %11, %cst_8 [1] : vector<2x8xf32> to vector<2xf32>
    %13 = vector.shape_cast %12 : vector<2xf32> to vector<2x1xf32>
    %c0_9 = arith.constant 0 : index
    %c0_10 = arith.constant 0 : index
    %14 = vector.load %arg5[%c0_9, %c0_10] : memref<2x1xf32, #tpu.memory_space<vmem>>, vector<2x1xf32>
    tpu.vector_store %arg5[%c0_9, %c0_10], %13 {strides = array<i32>} : memref<2x1xf32, #tpu.memory_space<vmem>>, vector<2x1xf32>,
    return
  }
  func.func @transform_0(%arg0: i32) -> (i32, i32) {
    %c0_i32 = arith.constant 0 : i32
    %c0_i32_0 = arith.constant 0 : i32
    return %arg0, %c0_i32 : i32, i32
  }
  func.func @transform_1(%arg0: i32) -> (i32, i32) {
    %c0_i32 = arith.constant 0 : i32
    %c0_i32_0 = arith.constant 0 : i32
    %c0_i32_1 = arith.constant 0 : i32
    return %c0_i32, %c0_i32_0 : i32, i32
  }
  func.func @transform_2(%arg0: i32) -> (i32, i32) {
    %c0_i32 = arith.constant 0 : i32
    %c0_i32_0 = arith.constant 0 : i32
    %c0_i32_1 = arith.constant 0 : i32
    return %c0_i32, %c0_i32_0 : i32, i32
  }
  func.func @transform_3(%arg0: i32) -> (i32, i32) {
    %c0_i32 = arith.constant 0 : i32
    %c0_i32_0 = arith.constant 0 : i32
    return %arg0, %c0_i32 : i32, i32
  }
  func.func @transform_4(%arg0: i32) -> (i32, i32) {
    %c0_i32 = arith.constant 0 : i32
    %c0_i32_0 = arith.constant 0 : i32
    return %arg0, %c0_i32 : i32, i32
  }
}

</mosaic_0001>

<llo_original>
// kernel: tpu_custom_call.1
$region0: #{tpu_custom_call.1}
  #allocation0 [shape = 'u32[]', space=smem, size = 0x4, offset = 0x4, fixed_abs, tag = 'smem constant byte address 0x4 - core index']
  #allocation1 [shape = 'u32[144,128]{1,0:T(1,128)}', space=vmem, size = 0x12000, scoped, tag = 'internal scratch']
  %s0 = inlined_call_operand.vmem [shape: f32[2,256], index: 0, kind: input, shape index: {}]
  %s1 = inlined_call_operand.vmem [shape: f32[256,8], index: 1, kind: input, shape index: {}]
  %s2 = inlined_call_operand.vmem [shape: f32[1,8], index: 2, kind: input, shape index: {}]
  %s3 = inlined_call_operand.vmem [shape: s32[2,1], index: 3, kind: input, shape index: {}]
  %s4 = inlined_call_operand.vmem [shape: f32[2,1], index: 4, kind: output, shape index: {}]
  %s5 = sld [smem:[#allocation0]]
  $region26: #{tpu_custom_call.1} parent=0
    _
  %s7 = ssub.s32 1, %s5
  %s8 = scalar_select 0, %s7, %s5
  // Predicated region
  $region2: #{tpu_custom_call.1} parent=0 // pred_check
    _
  $region3: #{tpu_custom_call.1} parent=0 // pred_check_branch
    %10 = sbr.rel (0) target = $region5
  $region4: #{tpu_custom_call.1} parent=0 // pred_region
    _
  $region5: #{tpu_custom_call.1} parent=0 // pred_fallthru
    _
  // Predicated region
  $region6: #{tpu_custom_call.1} parent=0 // pred_check
    _
  $region7: #{tpu_custom_call.1} parent=0 // pred_check_branch
    %12 = sbr.rel (0) target = $region9
  $region8: #{tpu_custom_call.1} parent=0 // pred_region
    _
  $region9: #{tpu_custom_call.1} parent=0 // pred_fallthru
    _
  // Predicated region
  $region10: #{tpu_custom_call.1} parent=0 // pred_check
    _
  $region11: #{tpu_custom_call.1} parent=0 // pred_check_branch
    %14 = sbr.rel (0) target = $region13
  $region12: #{tpu_custom_call.1} parent=0 // pred_region
    _
  $region13: #{tpu_custom_call.1} parent=0 // pred_fallthru
    _
  // Predicated region
  $region14: #{tpu_custom_call.1} parent=0 // pred_check
    _
  $region15: #{tpu_custom_call.1} parent=0 // pred_check_branch
    %16 = sbr.rel (0) target = $region17
  $region16: #{tpu_custom_call.1} parent=0 // pred_region
    _
  $region17: #{tpu_custom_call.1} parent=0 // pred_fallthru
    _
  %v17 = vld [vmem:[%s0] sm:$0xf]
  %v18 = vld [vmem:[%s1] sm:$0xff]
  %v19 = vld [vmem:[%s1 + $0x8] sm:$0xff]
  %v20 = vld [vmem:[%s1 + $0x10] sm:$0xff]
  %v21 = vld [vmem:[%s1 + $0x18] sm:$0xff]
  %v22 = vld [vmem:[%s1 + $0x20] sm:$0xff]
  %v23 = vld [vmem:[%s1 + $0x28] sm:$0xff]
  %v24 = vld [vmem:[%s1 + $0x30] sm:$0xff]
  %v25 = vld [vmem:[%s1 + $0x38] sm:$0xff]
  %v26 = vld [vmem:[%s1 + $0x40] sm:$0xff]
  %v27 = vld [vmem:[%s1 + $0x48] sm:$0xff]
  %v28 = vld [vmem:[%s1 + $0x50] sm:$0xff]
  %v29 = vld [vmem:[%s1 + $0x58] sm:$0xff]
  %v30 = vld [vmem:[%s1 + $0x60] sm:$0xff]
  %v31 = vld [vmem:[%s1 + $0x68] sm:$0xff]
  %v32 = vld [vmem:[%s1 + $0x70] sm:$0xff]
  %v33 = vld [vmem:[%s1 + $0x78] sm:$0xff]
  %v34 = vld [vmem:[%s1 + $0x80] sm:$0xff]
  %v35 = vld [vmem:[%s1 + $0x88] sm:$0xff]
  %v36 = vld [vmem:[%s1 + $0x90] sm:$0xff]
  %v37 = vld [vmem:[%s1 + $0x98] sm:$0xff]
  %v38 = vld [vmem:[%s1 + $0xa0] sm:$0xff]
  %v39 = vld [vmem:[%s1 + $0xa8] sm:$0xff]
  %v40 = vld [vmem:[%s1 + $0xb0] sm:$0xff]
  %v41 = vld [vmem:[%s1 + $0xb8] sm:$0xff]
  %v42 = vld [vmem:[%s1 + $0xc0] sm:$0xff]
  %v43 = vld [vmem:[%s1 + $0xc8] sm:$0xff]
  %v44 = vld [vmem:[%s1 + $0xd0] sm:$0xff]
  %v45 = vld [vmem:[%s1 + $0xd8] sm:$0xff]
  %v46 = vld [vmem:[%s1 + $0xe0] sm:$0xff]
  %v47 = vld [vmem:[%s1 + $0xe8] sm:$0xff]
  %v48 = vld [vmem:[%s1 + $0xf0] sm:$0xff]
  %v49 = vld [vmem:[%s1 + $0xf8] sm:$0xff]
  %v50 = vld [vmem:[%s2] sm:$0x1]
  %v52 = vlaneseq
  %v53 = vshrl.u32 %v52, 7
  %v54 = vsub.s32 0, %v53
  %v55 = vrot.slane %v50, %v54
  %v59 = vunpack.c.l.s4 1983009808
  %v60 = vunpack.c.0.s8 %v59
  %v61 = vlaneseq
  %v62 = vshrl.u32 %v61, 7
  %v63 = vsub.s32 %v60, %v62
  %v64 = vrot.slane %v17, %v63
  %v65 = vcombine.high %v64, %v64
  %68 = vmatprep.subr.mxu0 0.0
  %69 = vmatpush1.msra.mxu0 %v18
  %70 = vmatprep.subr.mxu0 0.0
  %71 = vmatpush1.msra.mxu0 %v19
  %72 = vmatprep.subr.mxu0 0.0
  %73 = vmatpush1.msra.mxu0 %v20
  %74 = vmatprep.subr.mxu0 0.0
  %75 = vmatpush1.msra.mxu0 %v21
  %76 = vmatprep.subr.mxu0 0.0
  %77 = vmatpush1.msra.mxu0 %v22
  %78 = vmatprep.subr.mxu0 0.0
  %79 = vmatpush1.msra.mxu0 %v23
  %80 = vmatprep.subr.mxu0 0.0
  %81 = vmatpush1.msra.mxu0 %v24
  %82 = vmatprep.subr.mxu0 0.0
  %83 = vmatpush1.msra.mxu0 %v25
  %84 = vmatprep.subr.mxu0 0.0
  %85 = vmatpush1.msra.mxu0 %v26
  %86 = vmatprep.subr.mxu0 0.0
  %87 = vmatpush1.msra.mxu0 %v27
  %88 = vmatprep.subr.mxu0 0.0
  %89 = vmatpush1.msra.mxu0 %v28
  %90 = vmatprep.subr.mxu0 0.0
  %91 = vmatpush1.msra.mxu0 %v29
  %92 = vmatprep.subr.mxu0 0.0
  %93 = vmatpush1.msra.mxu0 %v30
  %94 = vmatprep.subr.mxu0 0.0
  %95 = vmatpush1.msra.mxu0 %v31
  %96 = vmatprep.subr.mxu0 0.0
  %97 = vmatpush1.msra.mxu0 %v32
  %98 = vmatprep.subr.mxu0 0.0
  %99 = vmatpush1.msra.mxu0 %v33
  %100 = vmatprep.subr.mxu0 0.0
  %101 = vmatpush1.msra.mxu0 %v34
  %102 = vmatprep.subr.mxu0 0.0
  %103 = vmatpush1.msra.mxu0 %v35
  %104 = vmatprep.subr.mxu0 0.0
  %105 = vmatpush1.msra.mxu0 %v36
  %106 = vmatprep.subr.mxu0 0.0
  %107 = vmatpush1.msra.mxu0 %v37
  %108 = vmatprep.subr.mxu0 0.0
  %109 = vmatpush1.msra.mxu0 %v38
  %110 = vmatprep.subr.mxu0 0.0
  %111 = vmatpush1.msra.mxu0 %v39
  %112 = vmatprep.subr.mxu0 0.0
  %113 = vmatpush1.msra.mxu0 %v40
  %114 = vmatprep.subr.mxu0 0.0
  %115 = vmatpush1.msra.mxu0 %v41
  %116 = vmatprep.subr.mxu0 0.0
  %117 = vmatpush1.msra.mxu0 %v42
  %118 = vmatprep.subr.mxu0 0.0
  %119 = vmatpush1.msra.mxu0 %v43
  %120 = vmatprep.subr.mxu0 0.0
  %121 = vmatpush1.msra.mxu0 %v44
  %122 = vmatprep.subr.mxu0 0.0
  %123 = vmatpush1.msra.mxu0 %v45
  %124 = vmatprep.subr.mxu0 0.0
  %125 = vmatpush1.msra.mxu0 %v46
  %126 = vmatprep.subr.mxu0 0.0
  %127 = vmatpush1.msra.mxu0 %v47
  %128 = vmatprep.subr.mxu0 0.0
  %129 = vmatpush1.msra.mxu0 %v48
  %130 = vmatprep.subr.mxu0 0.0
  %131 = vmatpush1.msra.mxu0 %v49
  %132 = vmatprep.mubr.f32.mxu0 %v65
  %133 = vmatmul.mubr.f32.gmra.mrb[0].mxu0 %v64
  %v134 = vpop.f32.mrb[0].mxu0
  %v135 = vadd.f32 %v55, %v134
  %v136 = vpop.f32.mrb[0].mxu0
  %137 = vdwg.mxu0
  %v138 = vlaneseq
  %v139 = vand.u32 %v138, 127
  %v140 = vld [vmem:[%s3] sm:$0x3]
  %141 = vset.pattern.permute.xlu0 0
  %142 = vperm.xlu0 %141, %v140
  %v143 = vpop.permute.xlu0 %142
  %vm144 = vcmp.eq.s32.totalorder %v139, %v143
  %v145 = vsel %vm144, %v135, 0.0
  %vm146 = vcmask 58368
  %v147 = vsel %vm146, %v145, 0.0
  %148 = vadd.xlane.f32.xlu0 %v147
  %v149 = vpop.xlane.xlu0 %148
  %vm150 = vcmask 1024
  %151 = vst.msk [vmem:[%s4] sm:$0x3] %vm150, %v149
  // Predicated region
  $region18: #{tpu_custom_call.1} parent=0 // pred_check
    _
  $region19: #{tpu_custom_call.1} parent=0 // pred_check_branch
    %153 = sbr.rel (0) target = $region21
  $region20: #{tpu_custom_call.1} parent=0 // pred_region
    _
  $region21: #{tpu_custom_call.1} parent=0 // pred_fallthru
    _
  // Predicated region
  $region22: #{tpu_custom_call.1} parent=0 // pred_check
    _
  $region23: #{tpu_custom_call.1} parent=0 // pred_check_branch
    %155 = sbr.rel (0) target = $region25
  $region24: #{tpu_custom_call.1} parent=0 // pred_region
    _
  $region25: #{tpu_custom_call.1} parent=0 // pred_fallthru
    _

</llo_original>
